<compile_context>
chip_gen: v6e
topology: v6e:2x2x1
jax: 0.10.0
libtpu: 0.0.40
codegen_flags: <defaults>
</compile_context>

<pallas_src>
import math

import jax
import jax.numpy as jnp
from jax.experimental import pallas as pl
from jax.experimental.pallas import tpu as pltpu


def _drop_path_kernel(scale_ref, x_ref, o_ref):
    """scale_ref: (bs, 1) per-sample scale (0 or 1/keep_prob) in x.dtype.
    x_ref / o_ref: (bs, tc) tile.  One fused broadcast-multiply, no f32
    round-trip.  With the feature axis innermost in the grid the scale block
    index is constant across the inner loop, so it is not re-DMA'd."""
    o_ref[...] = x_ref[...] * scale_ref[...]


def _sublane_tile(itemsize: int) -> int:
    """Sublane packing tile for the dtype: 8 (f32), 16 (bf16), 32 (int8/fp8)."""
    return max(8, 32 // max(1, itemsize))


def _target_block_bytes():
    """Chip-aware per-block byte target and whether the chip has >1 TensorCore."""
    try:
        kind = jax.devices()[0].device_kind.lower()
    except Exception:  # pragma: no cover - defensive
        kind = ""
    if "v7" in kind:
        # Fast HBM (~3.2 TB/s) but only 64 MiB physical VMEM and 2 TCs.
        # 4 MiB blocks -> 4 double-buffered buffers = 16 MiB, well inside the
        # default scoped limit; halves the per-step overhead vs 2 MiB.
        return 4 * 1024 * 1024, True
    if "v6" in kind:
        # 4 MiB blocks fit the 32 MiB default scoped VMEM with no flag changes.
        return 4 * 1024 * 1024, False
    # v5e (16 MiB default scoped VMEM) / unknown: stay conservative.
    return 2 * 1024 * 1024, False


def _pick_block(B, M, itemsize, target_bytes, multi_core):
    """Pick a (bs, tc) block: bs a multiple of the sublane tile (or == B),
    tc a multiple of 128 (or == M when M < 128), total ~target_bytes."""
    sub = _sublane_tile(itemsize)

    # Lane axis: widest multiple of 128 that fits the budget at `sub` rows.
    if M < 128:
        tc = M  # full last dim is always a legal block dim
    else:
        budget_tc = max(128, (target_bytes // (sub * itemsize)) // 128 * 128)
        tc = min(budget_tc, (M // 128) * 128)

    # Row axis: fill the remaining budget; multiple of the sublane tile or == B.
    if B <= sub:
        bs = B
    else:
        rows = max(sub, target_bytes // max(1, tc * itemsize))
        bs = max(sub, min((B // sub) * sub, (rows // sub) * sub))

    # v7x: guarantee >= 2 blocks along a parallel axis when the grid would be
    # (1, 1), so both TensorCores (and their DMA engines) get work.
    if multi_core and pl.cdiv(B, bs) * pl.cdiv(M, tc) == 1:
        if tc >= 256:
            tc = ((tc // 2 + 127) // 128) * 128
        elif bs >= 2 * sub:
            bs = (bs // 2 // sub) * sub

    return bs, tc


def drop_path_pallas(x, *, drop_prob: float = 0.0, training: bool = False,
                     key=None, seed: int = 0):
    """Pallas equivalent of torch `drop_path(x, drop_prob=..., training=...)`."""
    if drop_prob == 0.0 or not training:
        # Early-return path of the PyTorch reference (identity).
        return x

    if drop_prob >= 1.0:
        # keep_prob == 0: every sample is dropped.  (The literal torch code
        # would produce NaN from x/0 * 0; zeros are the intended semantics.)
        return jnp.zeros_like(x)

    keep_prob = 1.0 - float(drop_prob)
    if key is None:
        key = jax.random.PRNGKey(seed)

    orig_shape = x.shape
    B = orig_shape[0]
    M = int(math.prod(orig_shape[1:]))

    # Per-sample mask computed once, outside the data loop.
    # torch: random_tensor = floor(keep_prob + rand) in {0, 1};
    #        out = x / keep_prob * random_tensor
    # NOTE: casting 1/keep_prob to x.dtype (e.g. bf16) quantizes the scale
    # slightly vs torch's division; fine for stochastic depth.
    u = jax.random.uniform(key, (B, 1), dtype=jnp.float32)
    scale = (jnp.floor(keep_prob + u) * (1.0 / keep_prob)).astype(x.dtype)  # (B, 1)

    # Tiny or lane-sparse inputs: a Pallas call is pure overhead; XLA fuses the
    # broadcast multiply for free.
    if M < 128 or x.size < 8 * 128:
        return x * scale.reshape((B,) + (1,) * (x.ndim - 1))

    x2 = x.reshape(B, M)

    target_bytes, multi_core = _target_block_bytes()
    bs, tc = _pick_block(B, M, x.dtype.itemsize, target_bytes, multi_core)
    grid = (pl.cdiv(B, bs), pl.cdiv(M, tc))

    y2 = pl.pallas_call(
        _drop_path_kernel,
        out_shape=jax.ShapeDtypeStruct((B, M), x.dtype),
        grid_spec=pl.GridSpec(
            grid=grid,
            in_specs=[
                pl.BlockSpec((bs, 1), lambda i, j: (i, 0)),    # per-sample scale
                pl.BlockSpec((bs, tc), lambda i, j: (i, j)),   # data tile
            ],
            out_specs=pl.BlockSpec((bs, tc), lambda i, j: (i, j)),
        ),
        compiler_params=pltpu.CompilerParams(
            dimension_semantics=("parallel", "parallel"),
        ),
        cost_estimate=pl.CostEstimate(
            flops=int(x.size),
            transcendentals=0,
            bytes_accessed=2 * int(x.size) * x.dtype.itemsize,
        ),
        # NOTE: could add input_output_aliases={1: 0} to donate x when the
        # caller does not reuse it; left off here since the test reads x after.
    )(scale, x2)

    return y2.reshape(orig_shape)


class DropPath:
    """Mirror of the PyTorch nn.Module (no parameters)."""

    def __init__(self, drop_prob: float = 0.0) -> None:
        self.drop_prob = drop_prob
        self.training = True

    def __call__(self, x, *, key=None, seed: int = 0):
        return drop_path_pallas(
            x, drop_prob=self.drop_prob, training=self.training,
            key=key, seed=seed,
        )


def _check_drop_path(x, y, keep_prob):
    """Each sample must be entirely dropped (zeros) or scaled by 1/keep_prob."""
    for b in range(x.shape[0]):
        ob = y[b]
        scaled = x[b] / keep_prob
        is_zero = bool(jnp.allclose(ob, 0.0, atol=1e-6))
        is_scaled = bool(jnp.allclose(ob, scaled, rtol=1e-5, atol=1e-5))
        assert is_zero or is_scaled, f"sample {b}: not a valid drop-path output"


if __name__ == "__main__":
    key = jax.random.PRNGKey(0)
    drop_prob = 0.25
    keep_prob = 1.0 - drop_prob

    mod = DropPath(drop_prob)
    mod.training = True

    # ViT token layout (batch, tokens, hidden) -> flattened M = 1536 (lane-dense).
    x = jax.random.normal(key, (4, 8, 192), dtype=jnp.float32)
    y = jax.block_until_ready(mod(x, seed=1234))
    _check_drop_path(x, y, keep_prob)

    # Ragged flattened feature dim (M = 7 * 33 = 231, not a multiple of 128):
    # exercises the masked edge block path (no pad/slice round-trips).
    xr = jax.random.normal(jax.random.PRNGKey(1), (5, 7, 33), dtype=jnp.float32)
    yr = jax.block_until_ready(mod(xr, seed=7))
    _check_drop_path(xr, yr, keep_prob)

    # bf16 path (sublane-tile-aware bs).
    xb = jax.random.normal(jax.random.PRNGKey(2), (4, 8, 192), dtype=jnp.bfloat16)
    yb = jax.block_until_ready(mod(xb, seed=99))
    for b in range(xb.shape[0]):
        ob = yb[b].astype(jnp.float32)
        scaled = xb[b].astype(jnp.float32) / keep_prob
        ok = bool(jnp.allclose(ob, 0.0, atol=1e-3)) or bool(
            jnp.allclose(ob, scaled, rtol=2e-2, atol=2e-2))
        assert ok, f"bf16 sample {b}: not a valid drop-path output"

    # Eval path (and drop_prob == 0): identity.
    mod.training = False
    y_eval = jax.block_until_ready(mod(x))
    assert bool(jnp.allclose(y_eval, x))

    # drop_prob == 1.0 guard: all samples dropped (zeros), not NaN.
    mod_all = DropPath(1.0)
    mod_all.training = True
    y_all = jax.block_until_ready(mod_all(x, seed=3))
    assert bool(jnp.allclose(y_all, 0.0))

    print("KERNEL_OK")
</pallas_src>

<mosaic_0001>
module attributes {stable_mosaic.version = 11 : i64} {
  func.func @_drop_path_kernel(%arg0: i32, %arg1: i32, %arg2: memref<4x1xf32, #tpu.memory_space<vmem>>, %arg3: memref<4x1536xf32, #tpu.memory_space<vmem>>, %arg4: memref<4x1536xf32, #tpu.memory_space<vmem>>) attributes {dimension_semantics = [#tpu.dimension_semantics<parallel>, #tpu.dimension_semantics<parallel>], iteration_bounds = array<i64: 1, 1>, scalar_prefetch = 0 : i64, scratch_operands = 0 : i64, tpu.core_type = #tpu.core_type<tc>, window_params = [{transform_indices = @transform_0, window_bounds = array<i64: 4, 1>}, {transform_indices = @transform_1, window_bounds = array<i64: 4, 1536>}, {transform_indices = @transform_2, window_bounds = array<i64: 4, 1536>}]} {
    %c0 = arith.constant 0 : index
    %c0_0 = arith.constant 0 : index
    %0 = vector.load %arg3[%c0, %c0_0] : memref<4x1536xf32, #tpu.memory_space<vmem>>, vector<4x1536xf32>
    %c0_1 = arith.constant 0 : index
    %c0_2 = arith.constant 0 : index
    %1 = vector.load %arg2[%c0_1, %c0_2] : memref<4x1xf32, #tpu.memory_space<vmem>>, vector<4x1xf32>
    %2 = vector.broadcast %1 : vector<4x1xf32> to vector<4x1536xf32>
    %3 = arith.mulf %0, %2 : vector<4x1536xf32>
    %c0_3 = arith.constant 0 : index
    %c0_4 = arith.constant 0 : index
    %4 = vector.load %arg4[%c0_3, %c0_4] : memref<4x1536xf32, #tpu.memory_space<vmem>>, vector<4x1536xf32>
    tpu.vector_store %arg4[%c0_3, %c0_4], %3 {strides = array<i32>} : memref<4x1536xf32, #tpu.memory_space<vmem>>, vector<4x1536xf32>,
    return
  }
  func.func @transform_0(%arg0: i32, %arg1: i32) -> (i32, i32) {
    %c0_i32 = arith.constant 0 : i32
    %c0_i32_0 = arith.constant 0 : i32
    return %arg0, %c0_i32 : i32, i32
  }
  func.func @transform_1(%arg0: i32, %arg1: i32) -> (i32, i32) {
    %c0_i32 = arith.constant 0 : i32
    return %arg0, %arg1 : i32, i32
  }
  func.func @transform_2(%arg0: i32, %arg1: i32) -> (i32, i32) {
    %c0_i32 = arith.constant 0 : i32
    return %arg0, %arg1 : i32, i32
  }
}

</mosaic_0001>

<llo_original>
// kernel: tpu_custom_call.1
$region0: #{tpu_custom_call.1}
  #allocation0 [shape = 'u32[]', space=smem, size = 0x4, offset = 0x4, fixed_abs, tag = 'smem constant byte address 0x4 - core index']
  #allocation1 [shape = 'u32[144,128]{1,0:T(1,128)}', space=vmem, size = 0x12000, scoped, tag = 'internal scratch']
  %s0 = inlined_call_operand.vmem [shape: f32[4,1], index: 0, kind: input, shape index: {}]
  %s1 = inlined_call_operand.hbm [shape: f32[4,1536], index: 1, kind: input, shape index: {}]
  %s2 = inlined_call_operand.hbm [shape: f32[4,1536], index: 2, kind: output, shape index: {}]
  %s3 = sld [smem:[#allocation0]]
  $region22: #{tpu_custom_call.1} parent=0
    _
  %s5 = ssub.s32 1, %s3
  %s6 = scalar_select 0, %s5, %s3
  $region1: #{tpu_custom_call.1} parent=0
    #allocation2 [shape = 'u8[24576]{0}', space=vmem, size = 0x6000, scoped, tag = 'input window, operand 1, single buffered']
    #allocation3 [shape = 's32[1]{0}', space=sflag, size = 0x4, scoped, tag = 'scoped memory for tpu_custom_call.1']
    #allocation4 [shape = 's32[1]{0}', space=sflag, size = 0x4, scoped, tag = 'scoped memory for tpu_custom_call.1']
    #allocation5 [shape = 'u8[24576]{0}', space=vmem, size = 0x6000, scoped, tag = 'output window, operand 0, single buffered']
    %7 = vsyncpa [#allocation3], 0
    %8 = vsyncpa [#allocation4], 0
    // Predicated region
    $region2: #{tpu_custom_call.1} parent=1 // pred_check
      _
    $region3: #{tpu_custom_call.1} parent=1 // pred_check_branch
      %10 = sbr.rel (0) target = $region5
    $region4: #{tpu_custom_call.1} parent=1 // pred_region
      _
    $region5: #{tpu_custom_call.1} parent=1 // pred_fallthru
      _
    // Predicated region
    $region6: #{tpu_custom_call.1} parent=1 // pred_check
      _
    $region7: #{tpu_custom_call.1} parent=1 // pred_check_branch
      %12 = sbr.rel (0) target = $region9
    $region8: #{tpu_custom_call.1} parent=1 // pred_region
      %s14 = ssub.s32 768, 768
      %15 = vsyncadd [#allocation3], %s14
      %s17 = sshll.u32 [#allocation2], 4
      %s18 = int_to_ptr.vmem [resolvable:$true] %s17
      %20 = dma.hbm_to_vmem [thread:$0]  %s1, 768, %s18, [#allocation3]
    $region9: #{tpu_custom_call.1} parent=1 // pred_fallthru
      _
    // Predicated region
    $region10: #{tpu_custom_call.1} parent=1 // pred_check
      _
    $region11: #{tpu_custom_call.1} parent=1 // pred_check_branch
      %22 = sbr.rel (0) target = $region13
    $region12: #{tpu_custom_call.1} parent=1 // pred_region
      %23 = dma.done [#allocation3], 768
    $region13: #{tpu_custom_call.1} parent=1 // pred_fallthru
      _
    %v24 = vld [vmem:[#allocation2] sm:$0xff]
    %v25 = vld [vmem:[#allocation2 + $0x8] sm:$0xff]
    %v26 = vld [vmem:[#allocation2 + $0x10] sm:$0xff]
    %v27 = vld [vmem:[#allocation2 + $0x18] sm:$0xff]
    %v28 = vld [vmem:[#allocation2 + $0x20] sm:$0xff]
    %v29 = vld [vmem:[#allocation2 + $0x28] sm:$0xff]
    %v30 = vld [vmem:[%s0] sm:$0xf]
    %32 = vset.pattern.permute.xlu0 0
    %33 = vperm.xlu0 %32, %v30
    %v34 = vpop.permute.xlu0 %33
    %v36 = vunpack.c.l.s4 839922192
    %v37 = vunpack.c.0.s8 %v36
    %v38 = vlaneseq
    %v39 = vshrl.u32 %v38, 7
    %v40 = vsub.s32 %v37, %v39
    %v41 = vrot.slane %v34, %v40
    %v43 = vmul.f32 %v24, %v41
    %v44 = vmul.f32 %v25, %v41
    %v45 = vmul.f32 %v26, %v41
    %v46 = vmul.f32 %v27, %v41
    %v47 = vmul.f32 %v28, %v41
    %v48 = vmul.f32 %v29, %v41
    %49 = vst [vmem:[#allocation5] sm:$0xff] %v43
    %50 = vst [vmem:[#allocation5 + $0x8] sm:$0xff] %v44
    %51 = vst [vmem:[#allocation5 + $0x10] sm:$0xff] %v45
    %52 = vst [vmem:[#allocation5 + $0x18] sm:$0xff] %v46
    %53 = vst [vmem:[#allocation5 + $0x20] sm:$0xff] %v47
    %54 = vst [vmem:[#allocation5 + $0x28] sm:$0xff] %v48
    // Predicated region
    $region14: #{tpu_custom_call.1} parent=1 // pred_check
      _
    $region15: #{tpu_custom_call.1} parent=1 // pred_check_branch
      %56 = sbr.rel (0) target = $region17
    $region16: #{tpu_custom_call.1} parent=1 // pred_region
      %s58 = ssub.s32 768, 768
      %59 = vsyncadd [#allocation4], %s58
      %s61 = sshll.u32 [#allocation5], 4
      %s62 = int_to_ptr.vmem [resolvable:$true] %s61
      %64 = dma.vmem_to_hbm [thread:$0]  %s62, 768, %s2, [#allocation4]
    $region17: #{tpu_custom_call.1} parent=1 // pred_fallthru
      _
    // Predicated region
    $region18: #{tpu_custom_call.1} parent=1 // pred_check
      _
    $region19: #{tpu_custom_call.1} parent=1 // pred_check_branch
      %66 = sbr.rel (0) target = $region21
    $region20: #{tpu_custom_call.1} parent=1 // pred_region
      %67 = dma.done [#allocation4], 768
    $region21: #{tpu_custom_call.1} parent=1 // pred_fallthru
      _
    %68 = vsyncpa [#allocation3], 1
    %69 = vsyncpa [#allocation4], 1

</llo_original>
